<compile_context>
chip_gen: v7x
topology: tpu7x:2x2x1
jax: 0.10.0
libtpu: 0.0.40
codegen_flags: <defaults>
</compile_context>

<pallas_src>
import jax
import jax.numpy as jnp
import numpy as np
from jax.experimental import pallas as pl
from jax.experimental.pallas import tpu as pltpu

LSTM_UNITS = 75
HIDDEN = 2 * LSTM_UNITS        # 150
ATTN_UNITS = 32


def _attention_kernel(h_ref, wt_ref, bw_ref, v_ref, bv_ref, ctx_ref, aw_ref):
    # h_ref:  (Bt, T, H)   Bt sequences (no feature padding)
    # wt_ref: (H, A)       W.weight transposed
    # bw_ref: (1, A)       W.bias
    # v_ref:  (1, A)       V.weight as a row
    # bv_ref: (1, 1)       V.bias
    # ctx_ref:(Bt, H)      context vectors (lane-dense over H)
    # aw_ref: (Bt, T)      attention weights
    Bt, T, H = h_ref.shape
    A = wt_ref.shape[1]

    h = h_ref[...].astype(jnp.float32)               # (Bt, T, H)
    h2 = h.reshape(Bt * T, H)                        # cheap: trailing dim unchanged

    # u = tanh(W h + b_W) -> single big MXU matmul with M = Bt*T rows
    u = jnp.tanh(
        jnp.dot(h2, wt_ref[...], preferred_element_type=jnp.float32) + bw_ref[...]
    )                                                # (Bt*T, A)

    # scores = <u, v> + b_V  via VPU multiply + lane reduce (avoids N=1 matmul)
    u3 = u.reshape(Bt, T, A)
    v_row = v_ref[...].reshape(1, 1, A)
    s = jnp.sum(u3 * v_row, axis=-1) + bv_ref[...]   # (Bt, T)

    # softmax over the time axis
    m = jnp.max(s, axis=-1, keepdims=True)
    e = jnp.exp(s - m)
    w = e / jnp.sum(e, axis=-1, keepdims=True)       # (Bt, T)

    # context = sum_t w_t * h_t
    ctx = jnp.sum(w[:, :, None] * h, axis=1)         # (Bt, H)

    ctx_ref[...] = ctx.astype(ctx_ref.dtype)
    aw_ref[...] = w.astype(aw_ref.dtype)


def _choose_bt(B, T, H, itemsize=4):
    # Largest Bt (multiple of 8) whose double-buffered input block plus outputs
    # fits comfortably in the smallest default scoped-VMEM budget (v5e: 16 MiB),
    # capped at 512 so large batches keep >= 2 grid steps (v7x: 2 TensorCores).
    vmem_budget = 12 * 1024 * 1024
    per_row = 2 * (T * H + H + T) * itemsize         # dbl-buffered input + outputs
    bt = min(512, max(8, (vmem_budget // per_row) // 8 * 8))
    return min(bt, B)


def attention_layer(hidden_states, w_weight, w_bias, v_weight, v_bias, block_b=None):
    """hidden_states: (B, T, H) f32.  Returns (context (B, H), attention_weights (B, T, 1))."""
    B, T, H = hidden_states.shape
    A = w_weight.shape[0]
    dtype = hidden_states.dtype

    Bt = block_b if block_b is not None else _choose_bt(B, T, H)
    Bt = min(Bt, B)
    grid_b = pl.cdiv(B, Bt)

    # Tiny weight reshapes only (no padding / copies of the big tensor).
    wt = w_weight.T                      # (H, A)
    bw = w_bias.reshape(1, A)
    vr = v_weight.reshape(1, A)
    bv = v_bias.reshape(1, 1)

    ctx, aw = pl.pallas_call(
        _attention_kernel,
        out_shape=(
            jax.ShapeDtypeStruct((B, H), dtype),
            jax.ShapeDtypeStruct((B, T), dtype),
        ),
        grid_spec=pltpu.PrefetchScalarGridSpec(
            num_scalar_prefetch=0,
            grid=(grid_b,),
            in_specs=[
                # last two block dims equal full array dims (T, H) -> legal, unpadded
                pl.BlockSpec((Bt, T, H), lambda b: (b, 0, 0)),   # hidden_states block
                pl.BlockSpec((H, A), lambda b: (0, 0)),           # Wt (resident)
                pl.BlockSpec((1, A), lambda b: (0, 0)),           # bW
                pl.BlockSpec((1, A), lambda b: (0, 0)),           # V row
                pl.BlockSpec((1, 1), lambda b: (0, 0)),           # bV
            ],
            out_specs=[
                pl.BlockSpec((Bt, H), lambda b: (b, 0)),          # context (lane-dense)
                pl.BlockSpec((Bt, T), lambda b: (b, 0)),          # attention weights
            ],
        ),
        compiler_params=pltpu.CompilerParams(dimension_semantics=("parallel",)),
    )(hidden_states, wt, bw, vr, bv)

    return ctx, aw.reshape(B, T, 1)      # module's output layout


def _reference(hidden_states, w_weight, w_bias, v_weight, v_bias):
    u = jnp.tanh(jnp.einsum("bth,ah->bta", hidden_states, w_weight) + w_bias)
    s = jnp.einsum("bta,oa->bto", u, v_weight) + v_bias            # (B, T, 1)
    w = jax.nn.softmax(s, axis=1)
    ctx = jnp.sum(w * hidden_states, axis=1)
    return ctx, w


def _run_case(key, B, T, block_b=None):
    k1, k2, k3, k4, k5 = jax.random.split(key, 5)
    hidden_states = jax.random.normal(k1, (B, T, HIDDEN), dtype=jnp.float32)

    bound_w = 1.0 / np.sqrt(HIDDEN)
    bound_v = 1.0 / np.sqrt(ATTN_UNITS)
    w_weight = jax.random.uniform(k2, (ATTN_UNITS, HIDDEN), jnp.float32, -bound_w, bound_w)
    w_bias = jax.random.uniform(k3, (ATTN_UNITS,), jnp.float32, -bound_w, bound_w)
    v_weight = jax.random.uniform(k4, (1, ATTN_UNITS), jnp.float32, -bound_v, bound_v)
    v_bias = jax.random.uniform(k5, (1,), jnp.float32, -bound_v, bound_v)

    ctx, aw = attention_layer(hidden_states, w_weight, w_bias, v_weight, v_bias, block_b=block_b)
    jax.block_until_ready((ctx, aw))

    ctx_ref, aw_ref = _reference(hidden_states, w_weight, w_bias, v_weight, v_bias)
    assert ctx.shape == (B, HIDDEN) and aw.shape == (B, T, 1)
    np.testing.assert_allclose(np.asarray(ctx), np.asarray(ctx_ref), rtol=1e-5, atol=1e-5)
    np.testing.assert_allclose(np.asarray(aw), np.asarray(aw_ref), rtol=1e-5, atol=1e-5)


if __name__ == "__main__":
    key = jax.random.PRNGKey(0)
    k_a, k_b = jax.random.split(key)

    # Small shape consistent with the module (single block).
    _run_case(k_a, B=2, T=8)
    # Exercise multi-step grid + ragged edge block (B=40, Bt=16 -> grid=3, masked tail).
    _run_case(k_b, B=40, T=8, block_b=16)

    print("KERNEL_OK")
</pallas_src>

<mosaic_0001>
module attributes {stable_mosaic.version = 11 : i64} {
  func.func @_attention_kernel(%arg0: i32, %arg1: memref<2x8x150xf32, #tpu.memory_space<vmem>>, %arg2: memref<150x32xf32, #tpu.memory_space<vmem>>, %arg3: memref<1x32xf32, #tpu.memory_space<vmem>>, %arg4: memref<1x32xf32, #tpu.memory_space<vmem>>, %arg5: memref<1x1xf32, #tpu.memory_space<vmem>>, %arg6: memref<2x150xf32, #tpu.memory_space<vmem>>, %arg7: memref<2x8xf32, #tpu.memory_space<vmem>>) attributes {dimension_semantics = [#tpu.dimension_semantics<parallel>], iteration_bounds = array<i64: 1>, scalar_prefetch = 0 : i64, scratch_operands = 0 : i64, tpu.core_type = #tpu.core_type<tc>, window_params = [{transform_indices = @transform_0, window_bounds = array<i64: 2, 8, 150>}, {pipeline_mode = #tpu.pipeline_mode<synchronous>, transform_indices = @transform_1, window_bounds = array<i64: 150, 32>}, {pipeline_mode = #tpu.pipeline_mode<synchronous>, transform_indices = @transform_2, window_bounds = array<i64: 1, 32>}, {pipeline_mode = #tpu.pipeline_mode<synchronous>, transform_indices = @transform_3, window_bounds = array<i64: 1, 32>}, {pipeline_mode = #tpu.pipeline_mode<synchronous>, transform_indices = @transform_4, window_bounds = array<i64: 1, 1>}, {transform_indices = @transform_5, window_bounds = array<i64: 2, 150>}, {transform_indices = @transform_6, window_bounds = array<i64: 2, 8>}]} {
    %c0 = arith.constant 0 : index
    %c0_0 = arith.constant 0 : index
    %c0_1 = arith.constant 0 : index
    %0 = vector.load %arg1[%c0, %c0_0, %c0_1] : memref<2x8x150xf32, #tpu.memory_space<vmem>>, vector<2x8x150xf32>
    %1 = vector.shape_cast %0 : vector<2x8x150xf32> to vector<16x150xf32>
    %c0_2 = arith.constant 0 : index
    %c0_3 = arith.constant 0 : index
    %2 = vector.load %arg2[%c0_2, %c0_3] : memref<150x32xf32, #tpu.memory_space<vmem>>, vector<150x32xf32>
    %cst = arith.constant dense<0.000000e+00> : vector<16x32xf32>
    %3 = tpu.matmul %1, %2, %cst {dimension_numbers = #tpu.dot_dimension_numbers<[1], [0], [0], [1], [0, 0, 1, 1], [], []>} : vector<16x150xf32>, vector<150x32xf32>, vector<16x32xf32> -> vector<16x32xf32>
    %c0_4 = arith.constant 0 : index
    %c0_5 = arith.constant 0 : index
    %4 = vector.load %arg3[%c0_4, %c0_5] : memref<1x32xf32, #tpu.memory_space<vmem>>, vector<1x32xf32>
    %5 = vector.broadcast %4 : vector<1x32xf32> to vector<16x32xf32>
    %6 = arith.addf %3, %5 : vector<16x32xf32>
    %7 = math.tanh %6 : vector<16x32xf32>
    %8 = vector.shape_cast %7 : vector<16x32xf32> to vector<2x8x32xf32>
    %c0_6 = arith.constant 0 : index
    %c0_7 = arith.constant 0 : index
    %9 = vector.load %arg4[%c0_6, %c0_7] : memref<1x32xf32, #tpu.memory_space<vmem>>, vector<1x32xf32>
    %10 = vector.shape_cast %9 : vector<1x32xf32> to vector<1x1x32xf32>
    %11 = vector.broadcast %10 : vector<1x1x32xf32> to vector<2x8x32xf32>
    %12 = arith.mulf %8, %11 : vector<2x8x32xf32>
    %cst_8 = arith.constant dense<0.000000e+00> : vector<2x8xf32>
    %13 = vector.multi_reduction <add>, %12, %cst_8 [2] : vector<2x8x32xf32> to vector<2x8xf32>
    %c0_9 = arith.constant 0 : index
    %c0_10 = arith.constant 0 : index
    %14 = vector.load %arg5[%c0_9, %c0_10] : memref<1x1xf32, #tpu.memory_space<vmem>>, vector<1x1xf32>
    %15 = vector.broadcast %14 : vector<1x1xf32> to vector<2x8xf32>
    %16 = arith.addf %13, %15 : vector<2x8xf32>
    %cst_11 = arith.constant dense<0xFF800000> : vector<2xf32>
    %17 = vector.multi_reduction <maximumf>, %16, %cst_11 [1] : vector<2x8xf32> to vector<2xf32>
    %18 = vector.shape_cast %17 : vector<2xf32> to vector<2x1xf32>
    %19 = vector.broadcast %18 : vector<2x1xf32> to vector<2x8xf32>
    %20 = arith.subf %16, %19 : vector<2x8xf32>
    %21 = math.exp %20 : vector<2x8xf32>
    %cst_12 = arith.constant dense<0.000000e+00> : vector<2xf32>
    %22 = vector.multi_reduction <add>, %21, %cst_12 [1] : vector<2x8xf32> to vector<2xf32>
    %23 = vector.shape_cast %22 : vector<2xf32> to vector<2x1xf32>
    %24 = vector.broadcast %23 : vector<2x1xf32> to vector<2x8xf32>
    %25 = arith.divf %21, %24 : vector<2x8xf32>
    %26 = vector.shape_cast %25 : vector<2x8xf32> to vector<2x8x1xf32>
    %27 = vector.broadcast %26 : vector<2x8x1xf32> to vector<2x8x150xf32>
    %28 = arith.mulf %27, %0 : vector<2x8x150xf32>
    %cst_13 = arith.constant dense<0.000000e+00> : vector<2x150xf32>
    %29 = vector.multi_reduction <add>, %28, %cst_13 [1] : vector<2x8x150xf32> to vector<2x150xf32>
    %c0_14 = arith.constant 0 : index
    %c0_15 = arith.constant 0 : index
    %30 = vector.load %arg6[%c0_14, %c0_15] : memref<2x150xf32, #tpu.memory_space<vmem>>, vector<2x150xf32>
    tpu.vector_store %arg6[%c0_14, %c0_15], %29 {strides = array<i32>} : memref<2x150xf32, #tpu.memory_space<vmem>>, vector<2x150xf32>,
    %c0_16 = arith.constant 0 : index
    %c0_17 = arith.constant 0 : index
    %31 = vector.load %arg7[%c0_16, %c0_17] : memref<2x8xf32, #tpu.memory_space<vmem>>, vector<2x8xf32>
    tpu.vector_store %arg7[%c0_16, %c0_17], %25 {strides = array<i32>} : memref<2x8xf32, #tpu.memory_space<vmem>>, vector<2x8xf32>,
    return
  }
  func.func @transform_0(%arg0: i32) -> (i32, i32, i32) {
    %c0_i32 = arith.constant 0 : i32
    %c0_i32_0 = arith.constant 0 : i32
    %c0_i32_1 = arith.constant 0 : i32
    return %arg0, %c0_i32, %c0_i32_0 : i32, i32, i32
  }
  func.func @transform_1(%arg0: i32) -> (i32, i32) {
    %c0_i32 = arith.constant 0 : i32
    %c0_i32_0 = arith.constant 0 : i32
    %c0_i32_1 = arith.constant 0 : i32
    return %c0_i32, %c0_i32_0 : i32, i32
  }
  func.func @transform_2(%arg0: i32) -> (i32, i32) {
    %c0_i32 = arith.constant 0 : i32
    %c0_i32_0 = arith.constant 0 : i32
    %c0_i32_1 = arith.constant 0 : i32
    return %c0_i32, %c0_i32_0 : i32, i32
  }
  func.func @transform_3(%arg0: i32) -> (i32, i32) {
    %c0_i32 = arith.constant 0 : i32
    %c0_i32_0 = arith.constant 0 : i32
    %c0_i32_1 = arith.constant 0 : i32
    return %c0_i32, %c0_i32_0 : i32, i32
  }
  func.func @transform_4(%arg0: i32) -> (i32, i32) {
    %c0_i32 = arith.constant 0 : i32
    %c0_i32_0 = arith.constant 0 : i32
    %c0_i32_1 = arith.constant 0 : i32
    return %c0_i32, %c0_i32_0 : i32, i32
  }
  func.func @transform_5(%arg0: i32) -> (i32, i32) {
    %c0_i32 = arith.constant 0 : i32
    %c0_i32_0 = arith.constant 0 : i32
    return %arg0, %c0_i32 : i32, i32
  }
  func.func @transform_6(%arg0: i32) -> (i32, i32) {
    %c0_i32 = arith.constant 0 : i32
    %c0_i32_0 = arith.constant 0 : i32
    return %arg0, %c0_i32 : i32, i32
  }
}

</mosaic_0001>

<llo_original>
// kernel: tpu_custom_call.1
$region0: #{tpu_custom_call.1}
  #allocation0 [shape = 'u32[]', space=smem, size = 0x4, offset = 0x4, fixed_abs, tag = 'smem constant byte address 0x4 - core index']
  #allocation1 [shape = 'u32[144,128]{1,0:T(1,128)}', space=vmem, size = 0x12000, scoped, tag = 'internal scratch']
  #allocation2 [shape = 'f32[1,1]{1,0:T(1,128)S(1)}', space=vmem, size = 0x200, scoped, tag = 'scoped memory for tpu_custom_call.1']
  %s0 = inlined_call_operand.vmem [shape: f32[2,8,150], index: 0, kind: input, shape index: {}]
  %s1 = inlined_call_operand.vmem [shape: f32[150,32], index: 1, kind: input, shape index: {}]
  %s2 = inlined_call_operand.vmem [shape: f32[1,32], index: 2, kind: input, shape index: {}]
  %s3 = inlined_call_operand.vmem [shape: f32[1,32], index: 3, kind: input, shape index: {}]
  %s4 = inlined_call_operand.<no memory space> [shape: f32[1,1], index: 4, kind: input, shape index: {}]
  %s5 = inlined_call_operand.hbm [shape: f32[2,150], index: 5, kind: output, shape index: {0}]
  %s6 = inlined_call_operand.hbm [shape: f32[2,8], index: 6, kind: output, shape index: {1}]
  %7 = xla_tuple %s5, %s6
  %s8 = sld [smem:[#allocation0]]
  $region38: #{tpu_custom_call.1} parent=0
    _
  %s10 = ssub.s32 1, %s8
  %s11 = scalar_select 0, %s10, %s8
  %v12 = vstv %s4
  %13 = vst [vmem:[#allocation2] sm:$0x1] %v12
  $region1: #{tpu_custom_call.1} parent=0
    #allocation3 [shape = 'u8[2048]{0}', space=vmem, size = 0x800, scoped, tag = 'output window, operand 0, single buffered']
    #allocation4 [shape = 's32[1]{0}', space=sflag, size = 0x4, scoped, tag = 'scoped memory for tpu_custom_call.1']
    #allocation5 [shape = 'u8[1024]{0}', space=vmem, size = 0x400, scoped, tag = 'output window, operand 1, single buffered']
    #allocation6 [shape = 's32[1]{0}', space=sflag, size = 0x4, scoped, tag = 'scoped memory for tpu_custom_call.1']
    %14 = vsyncpa [#allocation4], 0
    %15 = vsyncpa [#allocation6], 0
    // Predicated region
    $region2: #{tpu_custom_call.1} parent=1 // pred_check
      _
    $region3: #{tpu_custom_call.1} parent=1 // pred_check_branch
      %17 = sbr.rel (0) target = $region5
    $region4: #{tpu_custom_call.1} parent=1 // pred_region
      _
    $region5: #{tpu_custom_call.1} parent=1 // pred_fallthru
      _
    // Predicated region
    $region6: #{tpu_custom_call.1} parent=1 // pred_check
      _
    $region7: #{tpu_custom_call.1} parent=1 // pred_check_branch
      %19 = sbr.rel (0) target = $region9
    $region8: #{tpu_custom_call.1} parent=1 // pred_region
      _
    $region9: #{tpu_custom_call.1} parent=1 // pred_fallthru
      _
    // Predicated region
    $region10: #{tpu_custom_call.1} parent=1 // pred_check
      _
    $region11: #{tpu_custom_call.1} parent=1 // pred_check_branch
      %21 = sbr.rel (0) target = $region13
    $region12: #{tpu_custom_call.1} parent=1 // pred_region
      _
    $region13: #{tpu_custom_call.1} parent=1 // pred_fallthru
      _
    // Predicated region
    $region14: #{tpu_custom_call.1} parent=1 // pred_check
      _
    $region15: #{tpu_custom_call.1} parent=1 // pred_check_branch
      %23 = sbr.rel (0) target = $region17
    $region16: #{tpu_custom_call.1} parent=1 // pred_region
      _
    $region17: #{tpu_custom_call.1} parent=1 // pred_fallthru
      _
    // Predicated region
    $region18: #{tpu_custom_call.1} parent=1 // pred_check
      _
    $region19: #{tpu_custom_call.1} parent=1 // pred_check_branch
      %25 = sbr.rel (0) target = $region21
    $region20: #{tpu_custom_call.1} parent=1 // pred_region
      _
    $region21: #{tpu_custom_call.1} parent=1 // pred_fallthru
      _
    %v26 = vld [vmem:[%s0] sm:$0xff]
    %v27 = vld [vmem:[%s0 + $0x8] sm:$0xff]
    %v28 = vld [vmem:[%s0 + $0x10] sm:$0xff]
    %v29 = vld [vmem:[%s0 + $0x18] sm:$0xff]
    %v30 = vld [vmem:[%s1] sm:$0xff]
    %v31 = vld [vmem:[%s1 + $0x8] sm:$0xff]
    %v32 = vld [vmem:[%s1 + $0x10] sm:$0xff]
    %v33 = vld [vmem:[%s1 + $0x18] sm:$0xff]
    %v34 = vld [vmem:[%s1 + $0x20] sm:$0xff]
    %v35 = vld [vmem:[%s1 + $0x28] sm:$0xff]
    %v36 = vld [vmem:[%s1 + $0x30] sm:$0xff]
    %v37 = vld [vmem:[%s1 + $0x38] sm:$0xff]
    %v38 = vld [vmem:[%s1 + $0x40] sm:$0xff]
    %v39 = vld [vmem:[%s1 + $0x48] sm:$0xff]
    %v40 = vld [vmem:[%s1 + $0x50] sm:$0xff]
    %v41 = vld [vmem:[%s1 + $0x58] sm:$0xff]
    %v42 = vld [vmem:[%s1 + $0x60] sm:$0xff]
    %v43 = vld [vmem:[%s1 + $0x68] sm:$0xff]
    %v44 = vld [vmem:[%s1 + $0x70] sm:$0xff]
    %v45 = vld [vmem:[%s1 + $0x78] sm:$0xff]
    %v46 = vld [vmem:[%s1 + $0x80] sm:$0xff]
    %v47 = vld [vmem:[%s1 + $0x88] sm:$0xff]
    %v48 = vld [vmem:[%s1 + $0x90] sm:$0x3f]
    %v49 = vld [vmem:[%s2] sm:$0x1]
    %v51 = vlaneseq
    %v52 = vshrl.u32 %v51, 7
    %v53 = vsub.s32 0, %v52
    %v54 = vrot.slane %v49, %v53
    %vm56 = vcmask 179200
    %v58 = vsel %vm56, %v27, 0
    %v61 = vsel %vm56, %v29, 0
    %vm63 = vcmask 1045504
    %v65 = vsel %vm63, %v48, 0
    %67 = vmatprep.subr.mxu0 0.0
    %68 = vmatpush1.msra.mxu0 %v30
    %69 = vmatprep.subr.mxu0 0.0
    %70 = vmatpush1.msra.mxu0 %v31
    %71 = vmatprep.subr.mxu0 0.0
    %72 = vmatpush1.msra.mxu0 %v32
    %73 = vmatprep.subr.mxu0 0.0
    %74 = vmatpush1.msra.mxu0 %v33
    %75 = vmatprep.subr.mxu0 0.0
    %76 = vmatpush1.msra.mxu0 %v34
    %77 = vmatprep.subr.mxu0 0.0
    %78 = vmatpush1.msra.mxu0 %v35
    %79 = vmatprep.subr.mxu0 0.0
    %80 = vmatpush1.msra.mxu0 %v36
    %81 = vmatprep.subr.mxu0 0.0
    %82 = vmatpush1.msra.mxu0 %v37
    %83 = vmatprep.subr.mxu0 0.0
    %84 = vmatpush1.msra.mxu0 %v38
    %85 = vmatprep.subr.mxu0 0.0
    %86 = vmatpush1.msra.mxu0 %v39
    %87 = vmatprep.subr.mxu0 0.0
    %88 = vmatpush1.msra.mxu0 %v40
    %89 = vmatprep.subr.mxu0 0.0
    %90 = vmatpush1.msra.mxu0 %v41
    %91 = vmatprep.subr.mxu0 0.0
    %92 = vmatpush1.msra.mxu0 %v42
    %93 = vmatprep.subr.mxu0 0.0
    %94 = vmatpush1.msra.mxu0 %v43
    %95 = vmatprep.subr.mxu0 0.0
    %96 = vmatpush1.msra.mxu0 %v44
    %97 = vmatprep.subr.mxu0 0.0
    %98 = vmatpush1.msra.mxu0 %v45
    %99 = vmatprep.subr.mxu0 0.0
    %100 = vmatpush1.msra.mxu0 %v46
    %101 = vmatprep.subr.mxu0 0.0
    %102 = vmatpush1.msra.mxu0 %v47
    %103 = vmatprep.subr.mxu0 0.0
    %104 = vmatpush1.msra.mxu0 %v65
    %105 = vmatprep.subr.mxu0 0.0
    %106 = vmatpush1.msra.mxu0 0.0
    %107 = vmatprep.subr.mxu0 0.0
    %108 = vmatpush1.msra.mxu0 0.0
    %109 = vmatprep.subr.mxu0 0.0
    %110 = vmatpush1.msra.mxu0 0.0
    %111 = vmatprep.subr.mxu0 0.0
    %112 = vmatpush1.msra.mxu0 0.0
    %113 = vmatprep.subr.mxu0 0.0
    %114 = vmatpush1.msra.mxu0 0.0
    %115 = vmatprep.subr.mxu0 0.0
    %116 = vmatpush1.msra.mxu0 0.0
    %117 = vmatprep.subr.mxu0 0.0
    %118 = vmatpush1.msra.mxu0 0.0
    %119 = vmatprep.subr.mxu0 0.0
    %120 = vmatpush1.msra.mxu0 0.0
    %121 = vmatprep.subr.mxu0 0.0
    %122 = vmatpush1.msra.mxu0 0.0
    %123 = vmatprep.subr.mxu0 0.0
    %124 = vmatpush1.msra.mxu0 0.0
    %125 = vmatprep.subr.mxu0 0.0
    %126 = vmatpush1.msra.mxu0 0.0
    %127 = vmatprep.subr.mxu0 0.0
    %128 = vmatpush1.msra.mxu0 0.0
    %129 = vmatprep.subr.mxu0 0.0
    %130 = vmatpush1.msra.mxu0 0.0
    %131 = vmatprep.mubr.f32.mxu0 %v58
    %132 = vmatmul.mubr.f32.gmra.mrb[0].mxu0 %v26
    %v133 = vpop.f32.mrb[0].mxu0
    %v134 = vadd.f32 %v54, %v133
    %v135 = vpop.f32.mrb[0].mxu0
    %136 = vmatprep.mubr.f32.mxu0 %v61
    %137 = vmatmul.mubr.f32.gmra.mrb[0].mxu0 %v28
    %v138 = vpop.f32.mrb[0].mxu0
    %v139 = vadd.f32 %v54, %v138
    %v140 = vpop.f32.mrb[0].mxu0
    %141 = vdwg.mxu0
    %v142 = vtanh.pop %v134
    %v143 = vtanh.pop %v139
    %v144 = vld [vmem:[%s3] sm:$0x1]
    %v146 = vlaneseq
    %v147 = vshrl.u32 %v146, 7
    %v148 = vsub.s32 0, %v147
    %v149 = vrot.slane %v144, %v148
    %v151 = vmul.f32 %v142, %v149
    %v152 = vmul.f32 %v143, %v149
    %vm153 = vcmask 261120
    %v154 = vsel %vm153, %v151, 0.0
    %155 = vadd.xlane.f32.xlu0 %v154
    %v156 = vpop.xlane.xlu0 %155
    %v157 = vsel %vm153, %v152, 0.0
    %158 = vadd.xlane.f32.xlu0 %v157
    %v159 = vpop.xlane.xlu0 %158
    %v160 = vld [vmem:[#allocation2] sm:$0x1]
    %v162 = vlaneseq
    %v163 = vshrl.u32 %v162, 7
    %v164 = vsub.s32 0, %v163
    %v165 = vrot.slane %v160, %v164
    %166 = vset.pattern.permute.xlu0 0
    %167 = vperm.xlu0 %166, %v165
    %v168 = vpop.permute.xlu0 %167
    %v170 = vadd.f32 %v156, %v168
    %v171 = vadd.f32 %v159, %v168
    %v174 = vlaneseq
    %v175 = vand.u32 %v174, 127
    %v176 = vlaneseq
    %v177 = vshrl.u32 %v176, 7
    %v178 = vsub.s32 %v175, %v177
    %v179 = vrot.slane %v170, %v178
    %v180 = vlaneseq
    %v181 = vshrl.u32 %v180, 7
    %v182 = vsub.s32 %v175, %v181
    %v183 = vrot.slane %v171, %v182
    %vm184 = vcmask 1041409
    %v185 = vsel %vm184, %v183, %v179
    %vm187 = vcmask 58368
    %v188 = vsel %vm187, %v185, -inf
    %189 = vmax.xlane.f32.xlu0 %v188
    %v190 = vpop.xlane.xlu0 %189
    %v192 = vlaneseq
    %v193 = vshrl.u32 %v192, 7
    %v194 = vsub.s32 0, %v193
    %v195 = vrot.slane %v190, %v194
    %v196 = vlaneseq
    %v197 = vshrl.u32 %v196, 7
    %v198 = vsub.s32 1, %v197
    %v199 = vrot.slane %v190, %v198
    %v202 = vsub.f32 %v170, %v195
    %v203 = vsub.f32 %v171, %v199
    %v204 = vmul.f32 %v202, 1.442695
    %v205 = vpow.pop %v204
    %v206 = vmul.f32 %v203, 1.442695
    %v207 = vpow.pop %v206
    %210 = vset.pattern.permute.xlu0 0
    %211 = vperm.xlu0 %210, %v205
    %v212 = vpop.permute.xlu0 %211
    %213 = vset.pattern.permute.xlu0 0
    %214 = vperm.xlu0 %213, %v207
    %v215 = vpop.permute.xlu0 %214
    %v216 = vlaneseq
    %v217 = vshrl.u32 %v216, 7
    %v218 = vsub.s32 %v175, %v217
    %v219 = vrot.slane %v212, %v218
    %v220 = vlaneseq
    %v221 = vshrl.u32 %v220, 7
    %v222 = vsub.s32 %v175, %v221
    %v223 = vrot.slane %v215, %v222
    %v224 = vsel %vm184, %v223, %v219
    %v226 = vsel %vm187, %v224, 0.0
    %227 = vadd.xlane.f32.xlu0 %v226
    %v228 = vpop.xlane.xlu0 %227
    %v230 = vlaneseq
    %v231 = vshrl.u32 %v230, 7
    %v232 = vsub.s32 0, %v231
    %v233 = vrot.slane %v228, %v232
    %v234 = vlaneseq
    %v235 = vshrl.u32 %v234, 7
    %v236 = vsub.s32 1, %v235
    %v237 = vrot.slane %v228, %v236
    %v240 = vrcp.pop %v233
    %v241 = vmul.f32 %v205, %v240
    %v242 = vrcp.pop %v237
    %v243 = vmul.f32 %v207, %v242
    %245 = vset.pattern.permute.xlu0 0
    %246 = vperm.xlu0 %245, %v241
    %v247 = vpop.permute.xlu0 %246
    %250 = vset.pattern.permute.xlu0 0
    %251 = vperm.xlu0 %250, %v243
    %v252 = vpop.permute.xlu0 %251
    %v254 = vmul.f32 %v247, %v26
    %v255 = vmul.f32 %v247, %v27
    %v256 = vmul.f32 %v252, %v28
    %v257 = vmul.f32 %v252, %v29
    %v258 = vrot.slane %v254, 4
    %v259 = vadd.f32 %v254, %v258
    %v260 = vrot.slane %v259, 2
    %v261 = vadd.f32 %v259, %v260
    %v262 = vrot.slane %v261, 1
    %v263 = vadd.f32 %v261, %v262
    %v264 = vsel %vm56, %v255, 0.0
    %v265 = vrot.slane %v264, 4
    %v266 = vadd.f32 %v264, %v265
    %v267 = vrot.slane %v266, 2
    %v268 = vadd.f32 %v266, %v267
    %v269 = vrot.slane %v268, 1
    %v270 = vadd.f32 %v268, %v269
    %v271 = vrot.slane %v256, 4
    %v272 = vadd.f32 %v256, %v271
    %v273 = vrot.slane %v272, 2
    %v274 = vadd.f32 %v272, %v273
    %v275 = vrot.slane %v274, 1
    %v276 = vadd.f32 %v274, %v275
    %v277 = vsel %vm56, %v257, 0.0
    %v278 = vrot.slane %v277, 4
    %v279 = vadd.f32 %v277, %v278
    %v280 = vrot.slane %v279, 2
    %v281 = vadd.f32 %v279, %v280
    %v282 = vrot.slane %v281, 1
    %v283 = vadd.f32 %v281, %v282
    %v288 = vcombine.low %v263, %v270
    %v290 = vunpack.c.l.s4 1983009808
    %v291 = vunpack.c.0.s8 %v290
    %v292 = vlaneseq
    %v293 = vshrl.u32 %v292, 7
    %v294 = vsub.s32 %v291, %v293
    %v295 = vrot.slane %v288, %v294
    %v296 = vcombine.low %v276, %v283
    %v298 = vunpack.c.l.s4 1983009808
    %v299 = vunpack.c.0.s8 %v298
    %v300 = vlaneseq
    %v301 = vshrl.u32 %v300, 7
    %v302 = vsub.s32 %v299, %v301
    %v303 = vrot.slane %v296, %v302
    %vm304 = vcmask 1044484
    %v305 = vsel %vm304, %v295, %v295
    %vm306 = vcmask 1046534
    %v307 = vsel %vm306, %v295, %v305
    %v308 = vrot.slane %v303, 7
    %v309 = vsel %vm184, %v308, %v307
    %vm310 = vcmask 1043459
    %v311 = vsel %vm310, %v308, %v309
    %vm312 = vcmask 1045509
    %v313 = vsel %vm312, %v308, %v311
    %vm314 = vcmask 1047559
    %v315 = vsel %vm314, %v308, %v313
    %vm317 = vcmask 1041408
    %vm318 = vcmask 175106
    %vm319 = vmor %vm318, %vm317
    %320 = vst.msk [vmem:[#allocation3] sm:$0xf] %vm319, %v315
    %v321 = vlaneseq
    %v322 = vshrl.u32 %v321, 7
    %v323 = vsub.s32 %v175, %v322
    %v324 = vrot.slane %v247, %v323
    %v325 = vlaneseq
    %v326 = vshrl.u32 %v325, 7
    %v327 = vsub.s32 %v175, %v326
    %v328 = vrot.slane %v252, %v327
    %v329 = vsel %vm184, %v328, %v324
    %331 = vst.msk [vmem:[#allocation5] sm:$0x3] %vm187, %v329
    // Predicated region
    $region22: #{tpu_custom_call.1} parent=1 // pred_check
      _
    $region23: #{tpu_custom_call.1} parent=1 // pred_check_branch
      %333 = sbr.rel (0) target = $region25
    $region24: #{tpu_custom_call.1} parent=1 // pred_region
      %s335 = ssub.s32 64, 64
      %336 = vsyncadd [#allocation4], %s335
      %s338 = sshll.u32 [#allocation3], 4
      %s339 = int_to_ptr.vmem [resolvable:$true] %s338
      %341 = dma.vmem_to_hbm [thread:$0]  %s339, 64, %s5, [#allocation4]
    $region25: #{tpu_custom_call.1} parent=1 // pred_fallthru
      _
    // Predicated region
    $region26: #{tpu_custom_call.1} parent=1 // pred_check
      _
    $region27: #{tpu_custom_call.1} parent=1 // pred_check_branch
      %343 = sbr.rel (0) target = $region29
    $region28: #{tpu_custom_call.1} parent=1 // pred_region
      %s345 = ssub.s32 32, 32
      %346 = vsyncadd [#allocation6], %s345
      %s348 = sshll.u32 [#allocation5], 4
      %s349 = int_to_ptr.vmem [resolvable:$true] %s348
      %351 = dma.vmem_to_hbm [thread:$0]  %s349, 32, %s6, [#allocation6]
    $region29: #{tpu_custom_call.1} parent=1 // pred_fallthru
      _
    // Predicated region
    $region30: #{tpu_custom_call.1} parent=1 // pred_check
      _
    $region31: #{tpu_custom_call.1} parent=1 // pred_check_branch
      %353 = sbr.rel (0) target = $region33
    $region32: #{tpu_custom_call.1} parent=1 // pred_region
      %354 = dma.done [#allocation4], 64
    $region33: #{tpu_custom_call.1} parent=1 // pred_fallthru
      _
    // Predicated region
    $region34: #{tpu_custom_call.1} parent=1 // pred_check
      _
    $region35: #{tpu_custom_call.1} parent=1 // pred_check_branch
      %356 = sbr.rel (0) target = $region37
    $region36: #{tpu_custom_call.1} parent=1 // pred_region
      %357 = dma.done [#allocation6], 32
    $region37: #{tpu_custom_call.1} parent=1 // pred_fallthru
      _
    %358 = vsyncpa [#allocation4], 1
    %359 = vsyncpa [#allocation6], 1

</llo_original>
